<compile_context>
chip_gen: v6e
topology: v6e:2x2x1
jax: 0.10.0
libtpu: 0.0.40
codegen_flags: <defaults>
</compile_context>

<pallas_src>
import jax
import jax.numpy as jnp
from jax.experimental import pallas as pl
from jax.experimental.pallas import tpu as pltpu  # noqa: F401  (TPU backend)


def _planner_kernel(x_ref, ctx_ref, w_in_ref, w_ctx_ref, w_e_ref, out_ref):
    BE = x_ref.shape[0]                      # B * n_events
    B = ctx_ref.shape[0]
    E = BE // B
    two_emb = w_in_ref.shape[1]              # 2 * embedding_dim
    n_out = w_e_ref.shape[1]                 # lane-dense output width (>=128)

    # embed_one_hot / embed_time fused: block-diagonal weight, biases folded via
    # the trailing ones column of x.  h == cat([oh, time], -1) of the reference.
    h = jnp.dot(x_ref[...], w_in_ref[...],
                preferred_element_type=jnp.float32)          # (BE, 2*EMB)

    # Single context matmul producing [additive output term | pre-sigmoid gate].
    ctx_out = jnp.dot(ctx_ref[...], w_ctx_ref[...],
                      preferred_element_type=jnp.float32)    # (B, n_out+2*EMB)
    add_term = ctx_out[:, :n_out]            # == (ctx@w_b + b_b) @ w_e + b_e
    gate = jax.nn.sigmoid(ctx_out[:, n_out:])  # == sigmoid(ctx@w_w + b_w)

    # Broadcast the per-batch gate / additive term over the n_events rows
    # (tiny sublane broadcast; E is a multiple of 8 so the merge is layout-free).
    gate = jnp.broadcast_to(gate[:, None, :], (B, E, two_emb)).reshape(BE, two_emb)
    add_term = jnp.broadcast_to(add_term[:, None, :], (B, E, n_out)).reshape(BE, n_out)

    # to_embedding on the multiplicatively-gated activations; additive path was
    # pre-folded through w_e, so just add the broadcast term.
    out = jnp.dot(h * gate, w_e_ref[...],
                  preferred_element_type=jnp.float32) + add_term
    out_ref[...] = out.astype(out_ref.dtype)                 # (BE, n_out)


def prepare_planner_params(params):
    """One-time transform of raw Linear params into fused kernel weights."""
    w_oh, b_oh = params["w_oh"], params["b_oh"]
    w_t, b_t = params["w_t"], params["b_t"]
    w_w, b_w = params["w_w"], params["b_w"]
    w_b, b_b = params["w_b"], params["b_b"]
    w_e, b_e = params["w_e"], params["b_e"]

    OH, EMB = w_oh.shape
    TD = w_t.shape[0]
    CD = w_w.shape[0]
    two_emb = 2 * EMB
    n_out = ((EMB + 127) // 128) * 128       # lane-dense output width

    # Fused [one_hot | time | 1] -> cat([embed_one_hot, embed_time]) weight.
    w_in = jnp.zeros((OH + TD + 1, two_emb), jnp.float32)
    w_in = w_in.at[:OH, :EMB].set(w_oh)
    w_in = w_in.at[OH:OH + TD, EMB:].set(w_t)
    w_in = w_in.at[OH + TD, :EMB].set(b_oh[0])
    w_in = w_in.at[OH + TD, EMB:].set(b_t[0])

    # Lane-dense padded to_embedding weight / bias.
    w_e_pad = jnp.zeros((two_emb, n_out), jnp.float32).at[:, :EMB].set(w_e)
    b_e_pad = jnp.zeros((n_out,), jnp.float32).at[:EMB].set(b_e[0])

    # Additive path pre-folded through w_e:
    #   [ctx | 1] @ w_ob == (ctx @ w_b + b_b) @ w_e_pad + b_e_pad
    w_b_aug = jnp.concatenate([w_b, b_b], axis=0)            # (CD+1, 2*EMB)
    w_ob = w_b_aug @ w_e_pad                                  # (CD+1, n_out)
    w_ob = w_ob.at[CD, :].add(b_e_pad)

    # Gate path (pre-sigmoid): [ctx | 1] @ w_gate == ctx @ w_w + b_w
    w_gate = jnp.concatenate([w_w, b_w], axis=0)              # (CD+1, 2*EMB)

    # Single fused context weight: columns [additive (n_out) | gate (2*EMB)].
    w_ctx = jnp.concatenate([w_ob, w_gate], axis=1)           # (CD+1, n_out+2EMB)

    return dict(w_in=w_in, w_ctx=w_ctx, w_e=w_e_pad)


def planner_forward(one_hot, time, context, prep):
    """Pallas implementation of Planner.forward (mixer_planning=False)."""
    B, E, OH = one_hot.shape
    TD = time.shape[-1]
    two_emb = prep["w_in"].shape[1]
    EMB = two_emb // 2
    n_out = prep["w_e"].shape[1]
    CD = prep["w_ctx"].shape[0] - 1
    context = context.reshape(B, CD)

    # Wrapper-side plumbing (free XLA ops): flatten to 2D and append the ones
    # column that carries the folded biases.
    ones_x = jnp.ones((B, E, 1), one_hot.dtype)
    x_aug = jnp.concatenate([one_hot, time, ones_x],
                            axis=-1).reshape(B * E, OH + TD + 1)
    ctx_aug = jnp.concatenate([context, jnp.ones((B, 1), context.dtype)], axis=-1)

    out2d = pl.pallas_call(
        _planner_kernel,
        out_shape=jax.ShapeDtypeStruct((B * E, n_out), jnp.float32),
    )(x_aug, ctx_aug, prep["w_in"], prep["w_ctx"], prep["w_e"])

    # Slice off the lane-padding columns and restore (B, n_events, EMB).
    return out2d[:, :EMB].reshape(B, E, EMB)


def init_params(key, one_hot_dim, time_dim, context_dim, embedding_dim):
    """Deterministic synthetic parameters (nn.Linear shapes, stored transposed)."""
    ks = jax.random.split(key, 10)

    def lin(kw, kb, fan_in, fan_out):
        bound = 1.0 / jnp.sqrt(fan_in)
        w = jax.random.uniform(kw, (fan_in, fan_out), jnp.float32, -bound, bound)
        b = jax.random.uniform(kb, (1, fan_out), jnp.float32, -bound, bound)
        return w, b

    w_oh, b_oh = lin(ks[0], ks[1], one_hot_dim, embedding_dim)
    w_t, b_t = lin(ks[2], ks[3], time_dim, embedding_dim)
    w_w, b_w = lin(ks[4], ks[5], context_dim, 2 * embedding_dim)
    w_b, b_b = lin(ks[6], ks[7], context_dim, 2 * embedding_dim)
    w_e, b_e = lin(ks[8], ks[9], 2 * embedding_dim, embedding_dim)

    return dict(w_oh=w_oh, b_oh=b_oh, w_t=w_t, b_t=b_t,
                w_w=w_w, b_w=b_w, w_b=w_b, b_b=b_b,
                w_e=w_e, b_e=b_e)


def planner_reference(one_hot, time, context, params):
    """Pure-JAX reference mirroring the PyTorch forward."""
    B = one_hot.shape[0]
    CD = params["w_w"].shape[0]
    context = context.reshape(B, CD)
    oh = one_hot @ params["w_oh"] + params["b_oh"]
    tm = time @ params["w_t"] + params["b_t"]
    x = jnp.concatenate([oh, tm], axis=-1)
    w = jax.nn.sigmoid(context @ params["w_w"] + params["b_w"])
    b = context @ params["w_b"] + params["b_b"]
    x = x * w[:, None, :] + b[:, None, :]
    return x @ params["w_e"] + params["b_e"]


if __name__ == "__main__":
    # Small shapes consistent with the module: context_dim=16, n_events=16.
    B, E = 2, 16
    ONE_HOT_DIM, TIME_DIM, CONTEXT_DIM, EMB_DIM = 16, 16, 16, 32

    key = jax.random.PRNGKey(0)
    k_oh, k_t, k_c, k_p = jax.random.split(key, 4)

    one_hot = jax.random.normal(k_oh, (B, E, ONE_HOT_DIM), jnp.float32)
    time = jax.random.normal(k_t, (B, E, TIME_DIM), jnp.float32)
    context = jax.random.normal(k_c, (B, CONTEXT_DIM), jnp.float32)

    params = init_params(k_p, ONE_HOT_DIM, TIME_DIM, CONTEXT_DIM, EMB_DIM)
    prep = prepare_planner_params(params)        # one-time fused-weight build

    out = planner_forward(one_hot, time, context, prep)
    out = jax.block_until_ready(out)

    ref = planner_reference(one_hot, time, context, params)
    assert out.shape == (B, E, EMB_DIM)
    assert jnp.allclose(out, ref, atol=1e-4, rtol=1e-4)

    print("KERNEL_OK")
</pallas_src>

<mosaic_0001>
module attributes {stable_mosaic.version = 11 : i64} {
  func.func @_planner_kernel(%arg0: memref<32x33xf32, #tpu.memory_space<vmem>>, %arg1: memref<2x17xf32, #tpu.memory_space<vmem>>, %arg2: memref<33x64xf32, #tpu.memory_space<vmem>>, %arg3: memref<17x192xf32, #tpu.memory_space<vmem>>, %arg4: memref<64x128xf32, #tpu.memory_space<vmem>>, %arg5: memref<32x128xf32, #tpu.memory_space<vmem>>) attributes {dimension_semantics = [], scalar_prefetch = 0 : i64, scratch_operands = 0 : i64, tpu.core_type = #tpu.core_type<tc>} {
    %c0 = arith.constant 0 : index
    %c0_0 = arith.constant 0 : index
    %0 = vector.load %arg0[%c0, %c0_0] : memref<32x33xf32, #tpu.memory_space<vmem>>, vector<32x33xf32>
    %c0_1 = arith.constant 0 : index
    %c0_2 = arith.constant 0 : index
    %1 = vector.load %arg2[%c0_1, %c0_2] : memref<33x64xf32, #tpu.memory_space<vmem>>, vector<33x64xf32>
    %cst = arith.constant dense<0.000000e+00> : vector<32x64xf32>
    %2 = tpu.matmul %0, %1, %cst {dimension_numbers = #tpu.dot_dimension_numbers<[1], [0], [0], [1], [0, 0, 1, 1], [], []>} : vector<32x33xf32>, vector<33x64xf32>, vector<32x64xf32> -> vector<32x64xf32>
    %c0_3 = arith.constant 0 : index
    %c0_4 = arith.constant 0 : index
    %3 = vector.load %arg1[%c0_3, %c0_4] : memref<2x17xf32, #tpu.memory_space<vmem>>, vector<2x17xf32>
    %c0_5 = arith.constant 0 : index
    %c0_6 = arith.constant 0 : index
    %4 = vector.load %arg3[%c0_5, %c0_6] : memref<17x192xf32, #tpu.memory_space<vmem>>, vector<17x192xf32>
    %cst_7 = arith.constant dense<0.000000e+00> : vector<2x192xf32>
    %5 = tpu.matmul %3, %4, %cst_7 {dimension_numbers = #tpu.dot_dimension_numbers<[1], [0], [0], [1], [0, 0, 1, 1], [], []>} : vector<2x17xf32>, vector<17x192xf32>, vector<2x192xf32> -> vector<2x192xf32>
    %6 = vector.extract_strided_slice %5 {offsets = [0, 0], sizes = [2, 128], strides = [1, 1]} : vector<2x192xf32> to vector<2x128xf32>
    %7 = vector.extract_strided_slice %5 {offsets = [0, 128], sizes = [2, 64], strides = [1, 1]} : vector<2x192xf32> to vector<2x64xf32>
    %8 = arith.negf %7 : vector<2x64xf32>
    %9 = math.exp %8 : vector<2x64xf32>
    %cst_8 = arith.constant 1.000000e+00 : f32
    %10 = vector.broadcast %cst_8 : f32 to vector<2x64xf32>
    %11 = arith.addf %10, %9 : vector<2x64xf32>
    %12 = arith.divf %10, %11 : vector<2x64xf32>
    %13 = vector.shape_cast %12 : vector<2x64xf32> to vector<2x1x64xf32>
    %14 = vector.shape_cast %13 : vector<2x1x64xf32> to vector<2x1x64xf32>
    %15 = vector.broadcast %14 : vector<2x1x64xf32> to vector<2x16x64xf32>
    %16 = vector.shape_cast %15 : vector<2x16x64xf32> to vector<32x64xf32>
    %17 = vector.shape_cast %6 : vector<2x128xf32> to vector<2x1x128xf32>
    %18 = vector.shape_cast %17 : vector<2x1x128xf32> to vector<2x1x128xf32>
    %19 = vector.broadcast %18 : vector<2x1x128xf32> to vector<2x16x128xf32>
    %20 = vector.shape_cast %19 : vector<2x16x128xf32> to vector<32x128xf32>
    %21 = arith.mulf %2, %16 : vector<32x64xf32>
    %c0_9 = arith.constant 0 : index
    %c0_10 = arith.constant 0 : index
    %22 = vector.load %arg4[%c0_9, %c0_10] : memref<64x128xf32, #tpu.memory_space<vmem>>, vector<64x128xf32>
    %cst_11 = arith.constant dense<0.000000e+00> : vector<32x128xf32>
    %23 = tpu.matmul %21, %22, %cst_11 {dimension_numbers = #tpu.dot_dimension_numbers<[1], [0], [0], [1], [0, 0, 1, 1], [], []>} : vector<32x64xf32>, vector<64x128xf32>, vector<32x128xf32> -> vector<32x128xf32>
    %24 = arith.addf %23, %20 : vector<32x128xf32>
    %c0_12 = arith.constant 0 : index
    %c0_13 = arith.constant 0 : index
    %25 = vector.load %arg5[%c0_12, %c0_13] : memref<32x128xf32, #tpu.memory_space<vmem>>, vector<32x128xf32>
    tpu.vector_store %arg5[%c0_12, %c0_13], %24 {strides = array<i32>} : memref<32x128xf32, #tpu.memory_space<vmem>>, vector<32x128xf32>,
    return
  }
}

</mosaic_0001>

<llo_original>
// kernel: tpu_custom_call.1
$region0: #{tpu_custom_call.1}
  #allocation0 [shape = 'u32[]', space=smem, size = 0x4, offset = 0x4, fixed_abs, tag = 'smem constant byte address 0x4 - core index']
  #allocation1 [shape = 'u32[144,128]{1,0:T(1,128)}', space=vmem, size = 0x12000, scoped, tag = 'internal scratch']
  %s0 = inlined_call_operand.hbm [shape: f32[32,33], index: 0, kind: input, shape index: {}]
  %s1 = inlined_call_operand.hbm [shape: f32[2,17], index: 1, kind: input, shape index: {}]
  %s2 = inlined_call_operand.hbm [shape: f32[33,64], index: 2, kind: input, shape index: {}]
  %s3 = inlined_call_operand.hbm [shape: f32[17,192], index: 3, kind: input, shape index: {}]
  %s4 = inlined_call_operand.hbm [shape: f32[64,128], index: 4, kind: input, shape index: {}]
  %s5 = inlined_call_operand.hbm [shape: f32[32,128], index: 5, kind: output, shape index: {}]
  %s6 = sld [smem:[#allocation0]]
  $region50: #{tpu_custom_call.1} parent=0
    _
  %s8 = ssub.s32 1, %s6
  %s9 = scalar_select 0, %s8, %s6
  $region1: #{tpu_custom_call.1} parent=0
    #allocation2 [shape = 'u8[16384]{0}', space=vmem, size = 0x4000, scoped, tag = 'input window, operand 0, single buffered']
    #allocation3 [shape = 's32[1]{0}', space=sflag, size = 0x4, scoped, tag = 'scoped memory for tpu_custom_call.1']
    #allocation4 [shape = 's32[1]{0}', space=sflag, size = 0x4, scoped, tag = 'scoped memory for tpu_custom_call.1']
    #allocation5 [shape = 'u8[1024]{0}', space=vmem, size = 0x400, scoped, tag = 'input window, operand 1, single buffered']
    #allocation6 [shape = 's32[1]{0}', space=sflag, size = 0x4, scoped, tag = 'scoped memory for tpu_custom_call.1']
    #allocation7 [shape = 'u8[20480]{0}', space=vmem, size = 0x5000, scoped, tag = 'input window, operand 2, single buffered']
    #allocation8 [shape = 'u8[24576]{0}', space=vmem, size = 0x6000, scoped, tag = 'input window, operand 3, single buffered']
    #allocation9 [shape = 's32[1]{0}', space=sflag, size = 0x4, scoped, tag = 'scoped memory for tpu_custom_call.1']
    #allocation10 [shape = 'u8[32768]{0}', space=vmem, size = 0x8000, scoped, tag = 'input window, operand 4, single buffered']
    #allocation11 [shape = 'u8[16384]{0}', space=vmem, size = 0x4000, scoped, tag = 'output window, operand 0, single buffered']
    %10 = vsyncpa [#allocation3], 0
    %11 = vsyncpa [#allocation6], 0
    %12 = vsyncpa [#allocation9], 0
    %13 = vsyncpa [#allocation4], 0
    // Predicated region
    $region2: #{tpu_custom_call.1} parent=1 // pred_check
      _
    $region3: #{tpu_custom_call.1} parent=1 // pred_check_branch
      %15 = sbr.rel (0) target = $region5
    $region4: #{tpu_custom_call.1} parent=1 // pred_region
      %s17 = ssub.s32 512, 512
      %18 = vsyncadd [#allocation3], %s17
      %s19 = sshll.u32 [#allocation2], 4
      %s20 = int_to_ptr.vmem [resolvable:$true] %s19
      %25 = dma.hbm_to_vmem [thread:$0]  %s0, 512, %s20, [#allocation3], 128, 128, 8
    $region5: #{tpu_custom_call.1} parent=1 // pred_fallthru
      _
    // Predicated region
    $region6: #{tpu_custom_call.1} parent=1 // pred_check
      _
    $region7: #{tpu_custom_call.1} parent=1 // pred_check_branch
      %27 = sbr.rel (0) target = $region9
    $region8: #{tpu_custom_call.1} parent=1 // pred_region
      %s29 = ssub.s32 32, 32
      %30 = vsyncadd [#allocation6], %s29
      %s32 = sshll.u32 [#allocation5], 4
      %s33 = int_to_ptr.vmem [resolvable:$true] %s32
      %35 = dma.hbm_to_vmem [thread:$0]  %s1, 32, %s33, [#allocation6]
    $region9: #{tpu_custom_call.1} parent=1 // pred_fallthru
      _
    // Predicated region
    $region10: #{tpu_custom_call.1} parent=1 // pred_check
      _
    $region11: #{tpu_custom_call.1} parent=1 // pred_check_branch
      %37 = sbr.rel (0) target = $region13
    $region12: #{tpu_custom_call.1} parent=1 // pred_region
      %s39 = ssub.s32 640, 640
      %40 = vsyncadd [#allocation6], %s39
      %s41 = sshll.u32 [#allocation7], 4
      %s42 = int_to_ptr.vmem [resolvable:$true] %s41
      %47 = dma.hbm_to_vmem [thread:$0]  %s2, 640, %s42, [#allocation6], 128, 128, 8
    $region13: #{tpu_custom_call.1} parent=1 // pred_fallthru
      _
    // Predicated region
    $region14: #{tpu_custom_call.1} parent=1 // pred_check
      _
    $region15: #{tpu_custom_call.1} parent=1 // pred_check_branch
      %49 = sbr.rel (0) target = $region17
    $region16: #{tpu_custom_call.1} parent=1 // pred_region
      %s51 = ssub.s32 768, 768
      %52 = vsyncadd [#allocation9], %s51
      %s53 = sshll.u32 [#allocation8], 4
      %s54 = int_to_ptr.vmem [resolvable:$true] %s53
      %59 = dma.hbm_to_vmem [thread:$0]  %s3, 768, %s54, [#allocation9], 256, 256, 16
    $region17: #{tpu_custom_call.1} parent=1 // pred_fallthru
      _
    // Predicated region
    $region18: #{tpu_custom_call.1} parent=1 // pred_check
      _
    $region19: #{tpu_custom_call.1} parent=1 // pred_check_branch
      %61 = sbr.rel (0) target = $region21
    $region20: #{tpu_custom_call.1} parent=1 // pred_region
      %s63 = ssub.s32 1024, 1024
      %64 = vsyncadd [#allocation9], %s63
      %s65 = sshll.u32 [#allocation10], 4
      %s66 = int_to_ptr.vmem [resolvable:$true] %s65
      %71 = dma.hbm_to_vmem [thread:$0]  %s4, 1024, %s66, [#allocation9], 128, 128, 8
    $region21: #{tpu_custom_call.1} parent=1 // pred_fallthru
      _
    // Predicated region
    $region22: #{tpu_custom_call.1} parent=1 // pred_check
      _
    $region23: #{tpu_custom_call.1} parent=1 // pred_check_branch
      %73 = sbr.rel (0) target = $region25
    $region24: #{tpu_custom_call.1} parent=1 // pred_region
      %74 = dma.done [#allocation3], 512
    $region25: #{tpu_custom_call.1} parent=1 // pred_fallthru
      _
    // Predicated region
    $region26: #{tpu_custom_call.1} parent=1 // pred_check
      _
    $region27: #{tpu_custom_call.1} parent=1 // pred_check_branch
      %76 = sbr.rel (0) target = $region29
    $region28: #{tpu_custom_call.1} parent=1 // pred_region
      %77 = dma.done [#allocation6], 32
    $region29: #{tpu_custom_call.1} parent=1 // pred_fallthru
      _
    // Predicated region
    $region30: #{tpu_custom_call.1} parent=1 // pred_check
      _
    $region31: #{tpu_custom_call.1} parent=1 // pred_check_branch
      %79 = sbr.rel (0) target = $region33
    $region32: #{tpu_custom_call.1} parent=1 // pred_region
      %80 = dma.done [#allocation6], 640
    $region33: #{tpu_custom_call.1} parent=1 // pred_fallthru
      _
    // Predicated region
    $region34: #{tpu_custom_call.1} parent=1 // pred_check
      _
    $region35: #{tpu_custom_call.1} parent=1 // pred_check_branch
      %82 = sbr.rel (0) target = $region37
    $region36: #{tpu_custom_call.1} parent=1 // pred_region
      %83 = dma.done [#allocation9], 768
    $region37: #{tpu_custom_call.1} parent=1 // pred_fallthru
      _
    // Predicated region
    $region38: #{tpu_custom_call.1} parent=1 // pred_check
      _
    $region39: #{tpu_custom_call.1} parent=1 // pred_check_branch
      %85 = sbr.rel (0) target = $region41
    $region40: #{tpu_custom_call.1} parent=1 // pred_region
      %86 = dma.done [#allocation9], 1024
    $region41: #{tpu_custom_call.1} parent=1 // pred_fallthru
      _
    %v87 = vld [vmem:[#allocation2] sm:$0xff]
    %v88 = vld [vmem:[#allocation2 + $0x8] sm:$0xff]
    %v89 = vld [vmem:[#allocation2 + $0x10] sm:$0xff]
    %v90 = vld [vmem:[#allocation2 + $0x18] sm:$0xff]
    %v91 = vld [vmem:[#allocation7] sm:$0xff]
    %v92 = vld [vmem:[#allocation7 + $0x8] sm:$0xff]
    %v93 = vld [vmem:[#allocation7 + $0x10] sm:$0xff]
    %v94 = vld [vmem:[#allocation7 + $0x18] sm:$0xff]
    %v95 = vld [vmem:[#allocation7 + $0x20] sm:$0x1]
    %vm96 = vcmask 269312
    %v98 = vsel %vm96, %v87, 0
    %v101 = vsel %vm96, %v88, 0
    %v104 = vsel %vm96, %v89, 0
    %v107 = vsel %vm96, %v90, 0
    %vm109 = vcmask 1040384
    %v111 = vsel %vm109, %v95, 0
    %113 = vmatprep.subr.mxu0 0.0
    %114 = vmatpush1.msra.mxu0 0.0
    %115 = vmatprep.subr.mxu0 0.0
    %116 = vmatpush1.msra.mxu0 0.0
    %117 = vmatprep.subr.mxu0 0.0
    %118 = vmatpush1.msra.mxu0 0.0
    %119 = vmatprep.subr.mxu0 0.0
    %120 = vmatpush1.msra.mxu0 0.0
    %121 = vmatprep.subr.mxu0 0.0
    %122 = vmatpush1.msra.mxu0 0.0
    %123 = vmatprep.subr.mxu0 0.0
    %124 = vmatpush1.msra.mxu0 0.0
    %125 = vmatprep.subr.mxu0 0.0
    %126 = vmatpush1.msra.mxu0 0.0
    %127 = vmatprep.subr.mxu0 0.0
    %128 = vmatpush1.msra.mxu0 0.0
    %129 = vmatprep.subr.mxu0 0.0
    %130 = vmatpush1.msra.mxu0 0.0
    %131 = vmatprep.subr.mxu0 0.0
    %132 = vmatpush1.msra.mxu0 0.0
    %133 = vmatprep.subr.mxu0 0.0
    %134 = vmatpush1.msra.mxu0 0.0
    %135 = vmatprep.subr.mxu0 0.0
    %136 = vmatpush1.msra.mxu0 %v111
    %137 = vmatprep.subr.mxu0 0.0
    %138 = vmatpush1.msra.mxu0 %v94
    %139 = vmatprep.subr.mxu0 0.0
    %140 = vmatpush1.msra.mxu0 %v93
    %141 = vmatprep.subr.mxu0 0.0
    %142 = vmatpush1.msra.mxu0 %v92
    %143 = vmatprep.subr.mxu0 0.0
    %144 = vmatpush1.msra.mxu0 %v91
    %145 = vmatprep.subr.mxu0 0.0
    %146 = vmatpush2.msra.mxu0 0.0
    %147 = vmatprep.subr.mxu0 0.0
    %148 = vmatpush2.msra.mxu0 0.0
    %149 = vmatprep.subr.mxu0 0.0
    %150 = vmatpush2.msra.mxu0 0.0
    %151 = vmatprep.subr.mxu0 0.0
    %152 = vmatpush2.msra.mxu0 0.0
    %153 = vmatprep.subr.mxu0 0.0
    %154 = vmatpush2.msra.mxu0 0.0
    %155 = vmatprep.subr.mxu0 0.0
    %156 = vmatpush2.msra.mxu0 0.0
    %157 = vmatprep.subr.mxu0 0.0
    %158 = vmatpush2.msra.mxu0 0.0
    %159 = vmatprep.subr.mxu0 0.0
    %160 = vmatpush2.msra.mxu0 0.0
    %161 = vmatprep.subr.mxu0 0.0
    %162 = vmatpush2.msra.mxu0 0.0
    %163 = vmatprep.subr.mxu0 0.0
    %164 = vmatpush2.msra.mxu0 0.0
    %165 = vmatprep.subr.mxu0 0.0
    %166 = vmatpush2.msra.mxu0 0.0
    %167 = vmatprep.subr.mxu0 0.0
    %168 = vmatpush2.msra.mxu0 0.0
    %169 = vmatprep.subr.mxu0 0.0
    %170 = vmatpush2.msra.mxu0 0.0
    %171 = vmatprep.subr.mxu0 0.0
    %172 = vmatpush2.msra.mxu0 0.0
    %173 = vmatprep.subr.mxu0 0.0
    %174 = vmatpush2.msra.mxu0 0.0
    %175 = vmatprep.subr.mxu0 0.0
    %176 = vmatpush2.msra.mxu0 0.0
    %177 = vmatprep.mubr.f32.mxu0 0.0
    %178 = vmatmul.mubr.f32.gmra.mxu0 %v98
    %v179 = vpop.f32.mrf.mxu0
    %v180 = vadd.f32 0.0, %v179
    %v181 = vpop.f32.mrf.mxu0
    %182 = vmatprep.mubr.f32.mxu0 0.0
    %183 = vmatmul.mubr.f32.gmra.mxu0 %v101
    %v184 = vpop.f32.mrf.mxu0
    %v185 = vadd.f32 0.0, %v184
    %v186 = vpop.f32.mrf.mxu0
    %187 = vmatprep.mubr.f32.mxu0 0.0
    %188 = vmatmul.mubr.f32.gmra.mxu0 %v104
    %v189 = vpop.f32.mrf.mxu0
    %v190 = vadd.f32 0.0, %v189
    %v191 = vpop.f32.mrf.mxu0
    %192 = vmatprep.mubr.f32.mxu0 0.0
    %193 = vmatmul.mubr.f32.gmra.mxu0 %v107
    %v194 = vpop.f32.mrf.mxu0
    %v195 = vadd.f32 0.0, %v194
    %v196 = vpop.f32.mrf.mxu0
    %197 = vdwg.mxu0
    %v198 = vld [vmem:[#allocation5] sm:$0x3]
    %v199 = vld [vmem:[#allocation8] sm:$0xff]
    %v200 = vld [vmem:[#allocation8 + $0x8] sm:$0xff]
    %v201 = vld [vmem:[#allocation8 + $0x10] sm:$0xff]
    %v202 = vld [vmem:[#allocation8 + $0x18] sm:$0xff]
    %v203 = vld [vmem:[#allocation8 + $0x20] sm:$0x1]
    %v204 = vld [vmem:[#allocation8 + $0x28] sm:$0x1]
    %vm205 = vcmask 138240
    %v207 = vsel %vm205, %v198, 0
    %v210 = vsel %vm109, %v203, 0
    %v213 = vsel %vm109, %v204, 0
    %215 = vmatprep.subr.mxu0 0.0
    %216 = vmatpush1.msra.mxu0 0.0
    %217 = vmatprep.subr.mxu0 0.0
    %218 = vmatpush1.msra.mxu0 0.0
    %219 = vmatprep.subr.mxu0 0.0
    %220 = vmatpush1.msra.mxu0 0.0
    %221 = vmatprep.subr.mxu0 0.0
    %222 = vmatpush1.msra.mxu0 0.0
    %223 = vmatprep.subr.mxu0 0.0
    %224 = vmatpush1.msra.mxu0 0.0
    %225 = vmatprep.subr.mxu0 0.0
    %226 = vmatpush1.msra.mxu0 0.0
    %227 = vmatprep.subr.mxu0 0.0
    %228 = vmatpush1.msra.mxu0 0.0
    %229 = vmatprep.subr.mxu0 0.0
    %230 = vmatpush1.msra.mxu0 0.0
    %231 = vmatprep.subr.mxu0 0.0
    %232 = vmatpush1.msra.mxu0 0.0
    %233 = vmatprep.subr.mxu0 0.0
    %234 = vmatpush1.msra.mxu0 0.0
    %235 = vmatprep.subr.mxu0 0.0
    %236 = vmatpush1.msra.mxu0 0.0
    %237 = vmatprep.subr.mxu0 0.0
    %238 = vmatpush1.msra.mxu0 0.0
    %239 = vmatprep.subr.mxu0 0.0
    %240 = vmatpush1.msra.mxu0 0.0
    %241 = vmatprep.subr.mxu0 %v213
    %242 = vmatpush1.msra.mxu0 %v210
    %243 = vmatprep.subr.mxu0 %v202
    %244 = vmatpush1.msra.mxu0 %v201
    %245 = vmatprep.subr.mxu0 %v200
    %246 = vmatpush1.msra.mxu0 %v199
    %247 = vmatprep.subr.mxu0 0.0
    %248 = vmatpush2.msra.mxu0 0.0
    %249 = vmatprep.subr.mxu0 0.0
    %250 = vmatpush2.msra.mxu0 0.0
    %251 = vmatprep.subr.mxu0 0.0
    %252 = vmatpush2.msra.mxu0 0.0
    %253 = vmatprep.subr.mxu0 0.0
    %254 = vmatpush2.msra.mxu0 0.0
    %255 = vmatprep.subr.mxu0 0.0
    %256 = vmatpush2.msra.mxu0 0.0
    %257 = vmatprep.subr.mxu0 0.0
    %258 = vmatpush2.msra.mxu0 0.0
    %259 = vmatprep.subr.mxu0 0.0
    %260 = vmatpush2.msra.mxu0 0.0
    %261 = vmatprep.subr.mxu0 0.0
    %262 = vmatpush2.msra.mxu0 0.0
    %263 = vmatprep.subr.mxu0 0.0
    %264 = vmatpush2.msra.mxu0 0.0
    %265 = vmatprep.subr.mxu0 0.0
    %266 = vmatpush2.msra.mxu0 0.0
    %267 = vmatprep.subr.mxu0 0.0
    %268 = vmatpush2.msra.mxu0 0.0
    %269 = vmatprep.subr.mxu0 0.0
    %270 = vmatpush2.msra.mxu0 0.0
    %271 = vmatprep.subr.mxu0 0.0
    %272 = vmatpush2.msra.mxu0 0.0
    %273 = vmatprep.subr.mxu0 0.0
    %274 = vmatpush2.msra.mxu0 0.0
    %275 = vmatprep.subr.mxu0 0.0
    %276 = vmatpush2.msra.mxu0 0.0
    %277 = vmatprep.subr.mxu0 0.0
    %278 = vmatpush2.msra.mxu0 0.0
    %279 = vmatprep.mubr.f32.mxu0 0.0
    %280 = vmatmul.mubr.f32.gmra.mxu0 %v207
    %v281 = vpop.f32.mrf.mxu0
    %v282 = vadd.f32 0.0, %v281
    %v283 = vpop.f32.mrf.mxu0
    %v284 = vadd.f32 0.0, %v283
    %285 = vdwg.mxu0
    %v286 = vxor.u32 %v284, 2147483648
    %v287 = vmul.f32 %v286, 1.442695
    %v288 = vpow.pop %v287
    %v289 = vadd.f32 %v288, 1.0
    %v290 = vrcp.pop %v289
    %v291 = vmul.f32 1.0, %v290
    %v294 = vunpack.c.l.s4 1966171168
    %v295 = vunpack.c.0.s8 %v294
    %v296 = vlaneseq
    %v297 = vshrl.u32 %v296, 7
    %v298 = vsub.s32 %v295, %v297
    %v299 = vrot.slane %v291, %v298
    %v300 = vcombine.high %v299, %v299
    %v302 = vunpack.c.l.s4 1966171168
    %v303 = vunpack.c.0.s8 %v302
    %v304 = vlaneseq
    %v305 = vshrl.u32 %v304, 7
    %v306 = vsub.s32 %v303, %v305
    %v307 = vrot.slane %v299, %v306
    %v309 = vunpack.c.l.s4 1966171168
    %v310 = vunpack.c.0.s8 %v309
    %v311 = vlaneseq
    %v312 = vshrl.u32 %v311, 7
    %v313 = vsub.s32 %v310, %v312
    %v314 = vrot.slane %v300, %v313
    %v315 = vlaneseq
    %v316 = vshrl.u32 %v315, 7
    %v317 = vsub.s32 0, %v316
    %v318 = vrot.slane %v307, %v317
    %v319 = vlaneseq
    %v320 = vshrl.u32 %v319, 7
    %v321 = vsub.s32 0, %v320
    %v322 = vrot.slane %v314, %v321
    %v327 = vunpack.c.l.s4 1966171168
    %v328 = vunpack.c.0.s8 %v327
    %v329 = vlaneseq
    %v330 = vshrl.u32 %v329, 7
    %v331 = vsub.s32 %v328, %v330
    %v332 = vrot.slane %v282, %v331
    %v333 = vcombine.high %v332, %v332
    %v335 = vunpack.c.l.s4 1966171168
    %v336 = vunpack.c.0.s8 %v335
    %v337 = vlaneseq
    %v338 = vshrl.u32 %v337, 7
    %v339 = vsub.s32 %v336, %v338
    %v340 = vrot.slane %v332, %v339
    %v342 = vunpack.c.l.s4 1966171168
    %v343 = vunpack.c.0.s8 %v342
    %v344 = vlaneseq
    %v345 = vshrl.u32 %v344, 7
    %v346 = vsub.s32 %v343, %v345
    %v347 = vrot.slane %v333, %v346
    %v348 = vlaneseq
    %v349 = vshrl.u32 %v348, 7
    %v350 = vsub.s32 0, %v349
    %v351 = vrot.slane %v340, %v350
    %v352 = vlaneseq
    %v353 = vshrl.u32 %v352, 7
    %v354 = vsub.s32 0, %v353
    %v355 = vrot.slane %v347, %v354
    %v358 = vmul.f32 %v180, %v318
    %v359 = vmul.f32 %v185, %v318
    %v360 = vmul.f32 %v190, %v322
    %v361 = vmul.f32 %v195, %v322
    %v362 = vld [vmem:[#allocation10] sm:$0xff]
    %v363 = vld [vmem:[#allocation10 + $0x8] sm:$0xff]
    %v364 = vld [vmem:[#allocation10 + $0x10] sm:$0xff]
    %v365 = vld [vmem:[#allocation10 + $0x18] sm:$0xff]
    %v366 = vld [vmem:[#allocation10 + $0x20] sm:$0xff]
    %v367 = vld [vmem:[#allocation10 + $0x28] sm:$0xff]
    %v368 = vld [vmem:[#allocation10 + $0x30] sm:$0xff]
    %v369 = vld [vmem:[#allocation10 + $0x38] sm:$0xff]
    %vm370 = vcmask 523264
    %v372 = vsel %vm370, %v358, 0
    %v375 = vsel %vm370, %v359, 0
    %v378 = vsel %vm370, %v360, 0
    %v381 = vsel %vm370, %v361, 0
    %383 = vmatprep.subr.mxu0 0.0
    %384 = vmatpush1.msra.mxu0 0.0
    %385 = vmatprep.subr.mxu0 0.0
    %386 = vmatpush1.msra.mxu0 0.0
    %387 = vmatprep.subr.mxu0 0.0
    %388 = vmatpush1.msra.mxu0 0.0
    %389 = vmatprep.subr.mxu0 0.0
    %390 = vmatpush1.msra.mxu0 0.0
    %391 = vmatprep.subr.mxu0 0.0
    %392 = vmatpush1.msra.mxu0 0.0
    %393 = vmatprep.subr.mxu0 0.0
    %394 = vmatpush1.msra.mxu0 0.0
    %395 = vmatprep.subr.mxu0 0.0
    %396 = vmatpush1.msra.mxu0 0.0
    %397 = vmatprep.subr.mxu0 0.0
    %398 = vmatpush1.msra.mxu0 0.0
    %399 = vmatprep.subr.mxu0 0.0
    %400 = vmatpush1.msra.mxu0 %v369
    %401 = vmatprep.subr.mxu0 0.0
    %402 = vmatpush1.msra.mxu0 %v368
    %403 = vmatprep.subr.mxu0 0.0
    %404 = vmatpush1.msra.mxu0 %v367
    %405 = vmatprep.subr.mxu0 0.0
    %406 = vmatpush1.msra.mxu0 %v366
    %407 = vmatprep.subr.mxu0 0.0
    %408 = vmatpush1.msra.mxu0 %v365
    %409 = vmatprep.subr.mxu0 0.0
    %410 = vmatpush1.msra.mxu0 %v364
    %411 = vmatprep.subr.mxu0 0.0
    %412 = vmatpush1.msra.mxu0 %v363
    %413 = vmatprep.subr.mxu0 0.0
    %414 = vmatpush1.msra.mxu0 %v362
    %415 = vmatprep.subr.mxu0 0.0
    %416 = vmatpush2.msra.mxu0 0.0
    %417 = vmatprep.subr.mxu0 0.0
    %418 = vmatpush2.msra.mxu0 0.0
    %419 = vmatprep.subr.mxu0 0.0
    %420 = vmatpush2.msra.mxu0 0.0
    %421 = vmatprep.subr.mxu0 0.0
    %422 = vmatpush2.msra.mxu0 0.0
    %423 = vmatprep.subr.mxu0 0.0
    %424 = vmatpush2.msra.mxu0 0.0
    %425 = vmatprep.subr.mxu0 0.0
    %426 = vmatpush2.msra.mxu0 0.0
    %427 = vmatprep.subr.mxu0 0.0
    %428 = vmatpush2.msra.mxu0 0.0
    %429 = vmatprep.subr.mxu0 0.0
    %430 = vmatpush2.msra.mxu0 0.0
    %431 = vmatprep.subr.mxu0 0.0
    %432 = vmatpush2.msra.mxu0 0.0
    %433 = vmatprep.subr.mxu0 0.0
    %434 = vmatpush2.msra.mxu0 0.0
    %435 = vmatprep.subr.mxu0 0.0
    %436 = vmatpush2.msra.mxu0 0.0
    %437 = vmatprep.subr.mxu0 0.0
    %438 = vmatpush2.msra.mxu0 0.0
    %439 = vmatprep.subr.mxu0 0.0
    %440 = vmatpush2.msra.mxu0 0.0
    %441 = vmatprep.subr.mxu0 0.0
    %442 = vmatpush2.msra.mxu0 0.0
    %443 = vmatprep.subr.mxu0 0.0
    %444 = vmatpush2.msra.mxu0 0.0
    %445 = vmatprep.subr.mxu0 0.0
    %446 = vmatpush2.msra.mxu0 0.0
    %447 = vmatprep.mubr.f32.mxu0 0.0
    %448 = vmatmul.mubr.f32.gmra.mxu0 %v372
    %v449 = vpop.f32.mrf.mxu0
    %v450 = vadd.f32 %v351, %v449
    %v451 = vpop.f32.mrf.mxu0
    %452 = vmatprep.mubr.f32.mxu0 0.0
    %453 = vmatmul.mubr.f32.gmra.mxu0 %v375
    %v454 = vpop.f32.mrf.mxu0
    %v455 = vadd.f32 %v351, %v454
    %v456 = vpop.f32.mrf.mxu0
    %457 = vmatprep.mubr.f32.mxu0 0.0
    %458 = vmatmul.mubr.f32.gmra.mxu0 %v378
    %v459 = vpop.f32.mrf.mxu0
    %v460 = vadd.f32 %v355, %v459
    %v461 = vpop.f32.mrf.mxu0
    %462 = vmatprep.mubr.f32.mxu0 0.0
    %463 = vmatmul.mubr.f32.gmra.mxu0 %v381
    %v464 = vpop.f32.mrf.mxu0
    %v465 = vadd.f32 %v355, %v464
    %v466 = vpop.f32.mrf.mxu0
    %467 = vdwg.mxu0
    %468 = vst [vmem:[#allocation11] sm:$0xff] %v450
    %469 = vst [vmem:[#allocation11 + $0x8] sm:$0xff] %v455
    %470 = vst [vmem:[#allocation11 + $0x10] sm:$0xff] %v460
    %471 = vst [vmem:[#allocation11 + $0x18] sm:$0xff] %v465
    // Predicated region
    $region42: #{tpu_custom_call.1} parent=1 // pred_check
      _
    $region43: #{tpu_custom_call.1} parent=1 // pred_check_branch
      %473 = sbr.rel (0) target = $region45
    $region44: #{tpu_custom_call.1} parent=1 // pred_region
      %s475 = ssub.s32 512, 512
      %476 = vsyncadd [#allocation4], %s475
      %s477 = sshll.u32 [#allocation11], 4
      %s478 = int_to_ptr.vmem [resolvable:$true] %s477
      %483 = dma.vmem_to_hbm [thread:$0]  %s478, 512, %s5, [#allocation4], 128, 128, 8
    $region45: #{tpu_custom_call.1} parent=1 // pred_fallthru
      _
    // Predicated region
    $region46: #{tpu_custom_call.1} parent=1 // pred_check
      _
    $region47: #{tpu_custom_call.1} parent=1 // pred_check_branch
      %485 = sbr.rel (0) target = $region49
    $region48: #{tpu_custom_call.1} parent=1 // pred_region
      %486 = dma.done [#allocation4], 512
    $region49: #{tpu_custom_call.1} parent=1 // pred_fallthru
      _
    %487 = vsyncpa [#allocation3], 1
    %488 = vsyncpa [#allocation6], 1
    %489 = vsyncpa [#allocation9], 1
    %490 = vsyncpa [#allocation4], 1

</llo_original>
